<compile_context>
chip_gen: v7x
topology: tpu7x:2x2x1
jax: 0.10.0
libtpu: 0.0.40
codegen_flags: <defaults>
</compile_context>

<pallas_src>
import functools

import jax
import jax.numpy as jnp
import numpy as np
from jax.experimental import pallas as pl
from jax.experimental.pallas import tpu as pltpu


def _round_up(x, m):
    return (x + m - 1) // m * m


def _make_encoder_kernel(n_candidates, tile_n):
    INT_MAX = int(jnp.iinfo(jnp.int32).max)

    def kernel(q_ref, c_ref, idx_ref, bd_ref, bi_ref):
        # q_ref:   (1, D)  query trajectory, flattened [x0, y0, x1, y1, ...]
        # c_ref:   (TN, D) tile of candidate trajectories (same layout)
        # idx_ref: (1, 1)  int32 output index
        # bd_ref / bi_ref: running best squared distance / best index carries
        i = pl.program_id(0)

        @pl.when(i == 0)
        def _init():
            bd_ref[...] = jnp.full((1, 1), jnp.inf, dtype=jnp.float32)
            bi_ref[...] = jnp.zeros((1, 1), dtype=jnp.int32)

        # Squared L2 distance of every candidate row to the query (VPU + one
        # lane reduction).  sqrt dropped: argmin is identical.
        diff = c_ref[...] - q_ref[...]                         # (TN, D)
        d2 = jnp.sum(diff * diff, axis=1, keepdims=True)       # (TN, 1)

        # Global candidate index per row; mask rows past the real N (garbage
        # from the partial boundary tile) with +inf so they can never win.
        row = i * tile_n + jax.lax.broadcasted_iota(jnp.int32, (tile_n, 1), 0)
        d2 = jnp.where(row < n_candidates, d2, jnp.inf)

        # Block-local min and first-occurrence argmin, both kept as (1, 1)
        # vector values (no vreg->sreg hop needed).
        local_min = jnp.min(d2, axis=0, keepdims=True)                      # (1, 1)
        local_arg = jnp.min(jnp.where(d2 == local_min, row, INT_MAX),
                            axis=0, keepdims=True)                          # (1, 1)

        # Running reduction across grid steps.  Strict '<' keeps the earliest
        # index on exact ties (grid walks candidates in order).
        prev_d = bd_ref[...]
        prev_i = bi_ref[...]
        better = local_min < prev_d
        new_d = jnp.where(better, local_min, prev_d)
        new_i = jnp.where(better, local_arg, prev_i)
        bd_ref[...] = new_d
        bi_ref[...] = new_i
        idx_ref[...] = new_i

    return kernel


@functools.partial(jax.jit, static_argnames=("tile_n",))
def discrete_traj_action_encode(pred_traj, candidates, *, tile_n=512):
    """Nearest-candidate index (DiscreteTrajActionEncoder.forward tensor math).

    pred_traj:  (steps, 2) float  — predicted trajectory positions.
    candidates: (N, steps, 2) float — stacked candidate trajectory arrays
                (basic_candidates + sampler samples).
    Returns an int32 scalar: argmin_n || candidates[n] - pred_traj ||_2.
    """
    n, steps, two = candidates.shape
    assert two == 2 and pred_traj.shape == (steps, 2)
    d = steps * 2

    # Free row-major flattens (no data movement) — nothing else happens
    # outside the kernel.
    cand = candidates.reshape(n, d).astype(jnp.float32)
    query = pred_traj.reshape(1, d).astype(jnp.float32)

    # Candidate tile: multiple of 8 sublanes, capped so even long-horizon
    # trajectories stay far under the scoped VMEM limit (v7x-safe).
    tn = _round_up(min(tile_n, _round_up(n, 8)), 8)
    grid = (pl.cdiv(n, tn),)

    kernel = _make_encoder_kernel(n, tn)

    out = pl.pallas_call(
        kernel,
        out_shape=jax.ShapeDtypeStruct((1, 1), jnp.int32),
        grid_spec=pltpu.PrefetchScalarGridSpec(
            num_scalar_prefetch=0,
            grid=grid,
            in_specs=[
                pl.BlockSpec((1, d), lambda i: (0, 0)),    # query: resident
                pl.BlockSpec((tn, d), lambda i: (i, 0)),   # candidate tile
            ],
            out_specs=pl.BlockSpec((1, 1), lambda i: (0, 0)),
            scratch_shapes=[
                pltpu.VMEM((1, 1), jnp.float32),   # running best distance^2
                pltpu.VMEM((1, 1), jnp.int32),     # running best index
            ],
        ),
        compiler_params=pltpu.CompilerParams(
            # Sequential argmin carry across candidate tiles.
            dimension_semantics=("arbitrary",),
        ),
    )(query, cand)

    return out[0, 0]


def _reference_idx(pred_traj, candidates):
    """Pure-numpy reference mirroring the PyTorch forward."""
    c = np.asarray(candidates, dtype=np.float64)
    q = np.asarray(pred_traj, dtype=np.float64)
    dists = np.linalg.norm((c - q[None]).reshape(c.shape[0], -1), axis=1)
    return int(np.argmin(dists))


if __name__ == "__main__":
    steps = 8
    n_basic = 5       # len(basic_candidates)
    n_samples = 32    # sampler.num_samples
    n = n_basic + n_samples   # action_dim = 37 candidates

    key = jax.random.PRNGKey(0)
    k1, k2 = jax.random.split(key)
    # Stacked candidate trajectory arrays (basic_candidates + sampler samples).
    candidates = jax.random.uniform(k1, (n, steps, 2), jnp.float32,
                                    minval=-50.0, maxval=50.0)
    # Predicted trajectory array (elm.Trajectory.trajectory_array).
    pred_traj = jax.random.uniform(k2, (steps, 2), jnp.float32,
                                   minval=-50.0, maxval=50.0)

    idx = discrete_traj_action_encode(pred_traj, candidates)
    idx = jax.block_until_ready(idx)

    ref = _reference_idx(pred_traj, candidates)
    assert int(idx) == ref, (int(idx), ref)

    print("KERNEL_OK")
</pallas_src>

<mosaic_0001>
module attributes {stable_mosaic.version = 11 : i64} {
  func.func @kernel(%arg0: i32, %arg1: memref<1x16xf32, #tpu.memory_space<vmem>>, %arg2: memref<40x16xf32, #tpu.memory_space<vmem>>, %arg3: memref<1x1xi32, #tpu.memory_space<vmem>>, %arg4: memref<1x1xf32, #tpu.memory_space<vmem>>, %arg5: memref<1x1xi32, #tpu.memory_space<vmem>>) attributes {dimension_semantics = [#tpu.dimension_semantics<arbitrary>], iteration_bounds = array<i64: 1>, scalar_prefetch = 0 : i64, scratch_operands = 2 : i64, tpu.core_type = #tpu.core_type<tc>, window_params = [{pipeline_mode = #tpu.pipeline_mode<synchronous>, transform_indices = @transform_0, window_bounds = array<i64: 1, 16>}, {transform_indices = @transform_1, window_bounds = array<i64: 40, 16>}, {pipeline_mode = #tpu.pipeline_mode<synchronous>, transform_indices = @transform_2, window_bounds = array<i64: 1, 1>}]} {
    %c0_i32 = arith.constant 0 : i32
    %0 = arith.cmpi eq, %arg0, %c0_i32 : i32
    %1 = arith.extui %0 : i1 to i32
    %c0_i32_0 = arith.constant 0 : i32
    %2 = arith.cmpi ne, %1, %c0_i32_0 : i32
    scf.if %2 {
      %cst_17 = arith.constant 0x7F800000 : f32
      %34 = vector.broadcast %cst_17 : f32 to vector<1x1xf32>
      %c0_18 = arith.constant 0 : index
      %c0_19 = arith.constant 0 : index
      %35 = vector.load %arg4[%c0_18, %c0_19] : memref<1x1xf32, #tpu.memory_space<vmem>>, vector<1x1xf32>
      tpu.vector_store %arg4[%c0_18, %c0_19], %34 {strides = array<i32>} : memref<1x1xf32, #tpu.memory_space<vmem>>, vector<1x1xf32>,
      %c0_i32_20 = arith.constant 0 : i32
      %36 = vector.broadcast %c0_i32_20 : i32 to vector<1x1xi32>
      %c0_21 = arith.constant 0 : index
      %c0_22 = arith.constant 0 : index
      %37 = vector.load %arg5[%c0_21, %c0_22] : memref<1x1xi32, #tpu.memory_space<vmem>>, vector<1x1xi32>
      tpu.vector_store %arg5[%c0_21, %c0_22], %36 {strides = array<i32>} : memref<1x1xi32, #tpu.memory_space<vmem>>, vector<1x1xi32>,
    } else {
    }
    %c0 = arith.constant 0 : index
    %c0_1 = arith.constant 0 : index
    %3 = vector.load %arg2[%c0, %c0_1] : memref<40x16xf32, #tpu.memory_space<vmem>>, vector<40x16xf32>
    %c0_2 = arith.constant 0 : index
    %c0_3 = arith.constant 0 : index
    %4 = vector.load %arg1[%c0_2, %c0_3] : memref<1x16xf32, #tpu.memory_space<vmem>>, vector<1x16xf32>
    %5 = vector.broadcast %4 : vector<1x16xf32> to vector<40x16xf32>
    %6 = arith.subf %3, %5 : vector<40x16xf32>
    %7 = arith.mulf %6, %6 : vector<40x16xf32>
    %cst = arith.constant dense<0.000000e+00> : vector<40xf32>
    %8 = vector.multi_reduction <add>, %7, %cst [1] : vector<40x16xf32> to vector<40xf32>
    %9 = vector.shape_cast %8 : vector<40xf32> to vector<40x1xf32>
    %c40_i32 = arith.constant 40 : i32
    %10 = arith.muli %arg0, %c40_i32 : i32
    %11 = tpu.iota {dimensions = array<i32: 0>} : vector<40x1xi32>
    %12 = vector.broadcast %10 : i32 to vector<40x1xi32>
    %13 = arith.addi %12, %11 : vector<40x1xi32>
    %c37_i32 = arith.constant 37 : i32
    %14 = vector.broadcast %c37_i32 : i32 to vector<40x1xi32>
    %15 = arith.cmpi slt, %13, %14 : vector<40x1xi32>
    %cst_4 = arith.constant 0x7F800000 : f32
    %16 = vector.broadcast %cst_4 : f32 to vector<40x1xf32>
    %17 = arith.select %15, %9, %16 : vector<40x1xi1>, vector<40x1xf32>
    %cst_5 = arith.constant dense<0x7F800000> : vector<1xf32>
    %18 = vector.multi_reduction <minimumf>, %17, %cst_5 [0] : vector<40x1xf32> to vector<1xf32>
    %19 = vector.shape_cast %18 : vector<1xf32> to vector<1x1xf32>
    %20 = vector.broadcast %19 : vector<1x1xf32> to vector<40x1xf32>
    %21 = arith.cmpf oeq, %17, %20 : vector<40x1xf32>
    %c2147483647_i32 = arith.constant 2147483647 : i32
    %22 = vector.broadcast %c2147483647_i32 : i32 to vector<40x1xi32>
    %23 = arith.select %21, %13, %22 : vector<40x1xi1>, vector<40x1xi32>
    %cst_6 = arith.constant dense<2147483647> : vector<1xi32>
    %24 = vector.multi_reduction <minsi>, %23, %cst_6 [0] : vector<40x1xi32> to vector<1xi32>
    %25 = vector.shape_cast %24 : vector<1xi32> to vector<1x1xi32>
    %c0_7 = arith.constant 0 : index
    %c0_8 = arith.constant 0 : index
    %26 = vector.load %arg4[%c0_7, %c0_8] : memref<1x1xf32, #tpu.memory_space<vmem>>, vector<1x1xf32>
    %c0_9 = arith.constant 0 : index
    %c0_10 = arith.constant 0 : index
    %27 = vector.load %arg5[%c0_9, %c0_10] : memref<1x1xi32, #tpu.memory_space<vmem>>, vector<1x1xi32>
    %28 = arith.cmpf olt, %19, %26 : vector<1x1xf32>
    %29 = arith.select %28, %19, %26 : vector<1x1xi1>, vector<1x1xf32>
    %30 = arith.select %28, %25, %27 : vector<1x1xi1>, vector<1x1xi32>
    %c0_11 = arith.constant 0 : index
    %c0_12 = arith.constant 0 : index
    %31 = vector.load %arg4[%c0_11, %c0_12] : memref<1x1xf32, #tpu.memory_space<vmem>>, vector<1x1xf32>
    tpu.vector_store %arg4[%c0_11, %c0_12], %29 {strides = array<i32>} : memref<1x1xf32, #tpu.memory_space<vmem>>, vector<1x1xf32>,
    %c0_13 = arith.constant 0 : index
    %c0_14 = arith.constant 0 : index
    %32 = vector.load %arg5[%c0_13, %c0_14] : memref<1x1xi32, #tpu.memory_space<vmem>>, vector<1x1xi32>
    tpu.vector_store %arg5[%c0_13, %c0_14], %30 {strides = array<i32>} : memref<1x1xi32, #tpu.memory_space<vmem>>, vector<1x1xi32>,
    %c0_15 = arith.constant 0 : index
    %c0_16 = arith.constant 0 : index
    %33 = vector.load %arg3[%c0_15, %c0_16] : memref<1x1xi32, #tpu.memory_space<vmem>>, vector<1x1xi32>
    tpu.vector_store %arg3[%c0_15, %c0_16], %30 {strides = array<i32>} : memref<1x1xi32, #tpu.memory_space<vmem>>, vector<1x1xi32>,
    return
  }
  func.func @transform_0(%arg0: i32) -> (i32, i32) {
    %c0_i32 = arith.constant 0 : i32
    %c0_i32_0 = arith.constant 0 : i32
    %c0_i32_1 = arith.constant 0 : i32
    return %c0_i32, %c0_i32_0 : i32, i32
  }
  func.func @transform_1(%arg0: i32) -> (i32, i32) {
    %c0_i32 = arith.constant 0 : i32
    %c0_i32_0 = arith.constant 0 : i32
    return %arg0, %c0_i32 : i32, i32
  }
  func.func @transform_2(%arg0: i32) -> (i32, i32) {
    %c0_i32 = arith.constant 0 : i32
    %c0_i32_0 = arith.constant 0 : i32
    %c0_i32_1 = arith.constant 0 : i32
    return %c0_i32, %c0_i32_0 : i32, i32
  }
}

</mosaic_0001>

<llo_original>
// kernel: discrete_traj_action_encode.1
$region0: #{discrete_traj_action_encode.1}
  #allocation0 [shape = 'u32[]', space=smem, size = 0x4, offset = 0x4, fixed_abs, tag = 'smem constant byte address 0x4 - core index']
  #allocation1 [shape = 'u32[144,128]{1,0:T(1,128)}', space=vmem, size = 0x12000, scoped, tag = 'internal scratch']
  #allocation2 [shape = 'f32[1,1]{1,0:T(1,128)}', space=vmem, size = 0x200, scoped, tag = 'scratch operand']
  #allocation3 [shape = 's32[1,1]{1,0:T(1,128)}', space=vmem, size = 0x200, scoped, tag = 'scratch operand']
  %s0 = inlined_call_operand.vmem [shape: f32[1,16], index: 0, kind: input, shape index: {}]
  %s1 = inlined_call_operand.vmem [shape: f32[37,16], index: 1, kind: input, shape index: {}]
  %s2 = inlined_call_operand.hbm [shape: s32[1,1], index: 2, kind: output, shape index: {}]
  %s3 = sld [smem:[#allocation0]]
  $region22: #{discrete_traj_action_encode.1} parent=0
    _
  %s5 = ssub.s32 1, %s3
  %s6 = scalar_select 0, %s5, %s3
  $region1: #{discrete_traj_action_encode.1} parent=0
    #allocation4 [shape = 'u8[512]{0}', space=vmem, size = 0x400, scoped, tag = 'output window, operand 0, single buffered']
    #allocation5 [shape = 's32[1]{0}', space=sflag, size = 0x4, scoped, tag = 'scoped memory for discrete_traj_action_encode.1']
    %7 = vsyncpa [#allocation5], 0
    // Predicated region
    $region2: #{discrete_traj_action_encode.1} parent=1 // pred_check
      _
    $region3: #{discrete_traj_action_encode.1} parent=1 // pred_check_branch
      %9 = sbr.rel (0) target = $region5
    $region4: #{discrete_traj_action_encode.1} parent=1 // pred_region
      _
    $region5: #{discrete_traj_action_encode.1} parent=1 // pred_fallthru
      _
    // Predicated region
    $region6: #{discrete_traj_action_encode.1} parent=1 // pred_check
      _
    $region7: #{discrete_traj_action_encode.1} parent=1 // pred_check_branch
      %11 = sbr.rel (0) target = $region9
    $region8: #{discrete_traj_action_encode.1} parent=1 // pred_region
      _
    $region9: #{discrete_traj_action_encode.1} parent=1 // pred_fallthru
      _
    %p12 = scmp.eq.s32.totalorder 0, 0
    // Predicated region
    $region10: #{discrete_traj_action_encode.1} parent=1 // pred_check
      %p13 = pneg %p12
    $region11: #{discrete_traj_action_encode.1} parent=1 // pred_check_branch
      %15 = sbr.rel (%p13) target = $region13
    $region12: #{discrete_traj_action_encode.1} parent=1 // pred_region
      %vm16 = vcmask 0
      %17 = vst.msk [vmem:[#allocation2] sm:$0x1] %vm16, inf
      %18 = vst.msk [vmem:[#allocation3] sm:$0x1] %vm16, 0
    $region13: #{discrete_traj_action_encode.1} parent=1 // pred_fallthru
      _
    %v19 = vld [vmem:[%s1] sm:$0xff]
    %v20 = vld [vmem:[%s1 + $0x8] sm:$0xff]
    %v21 = vld [vmem:[%s1 + $0x10] sm:$0xff]
    %v22 = vld [vmem:[%s1 + $0x18] sm:$0xff]
    %v23 = vld [vmem:[%s1 + $0x20] sm:$0xff]
    %v24 = vld [vmem:[%s0] sm:$0x1]
    %v26 = vlaneseq
    %v27 = vshrl.u32 %v26, 7
    %v28 = vsub.s32 0, %v27
    %v29 = vrot.slane %v24, %v28
    %v31 = vsub.f32 %v19, %v29
    %v32 = vsub.f32 %v20, %v29
    %v33 = vsub.f32 %v21, %v29
    %v34 = vsub.f32 %v22, %v29
    %v35 = vsub.f32 %v23, %v29
    %v36 = vmul.f32 %v31, %v31
    %v37 = vmul.f32 %v32, %v32
    %v38 = vmul.f32 %v33, %v33
    %v39 = vmul.f32 %v34, %v34
    %v40 = vmul.f32 %v35, %v35
    %vm41 = vcmask 130048
    %v42 = vsel %vm41, %v36, 0.0
    %43 = vadd.xlane.f32.xlu0 %v42
    %v44 = vpop.xlane.xlu0 %43
    %v45 = vsel %vm41, %v37, 0.0
    %46 = vadd.xlane.f32.xlu0 %v45
    %v47 = vpop.xlane.xlu0 %46
    %v48 = vsel %vm41, %v38, 0.0
    %49 = vadd.xlane.f32.xlu0 %v48
    %v50 = vpop.xlane.xlu0 %49
    %v51 = vsel %vm41, %v39, 0.0
    %52 = vadd.xlane.f32.xlu0 %v51
    %v53 = vpop.xlane.xlu0 %52
    %v54 = vsel %vm41, %v40, 0.0
    %55 = vadd.xlane.f32.xlu0 %v54
    %v56 = vpop.xlane.xlu0 %55
    %s57 = smul.u32 0, 40
    %v58 = vlaneseq
    %v59 = vshrl.u32 %v58, 7
    %v60 = vadd.s32 %v59, 8
    %v61 = vadd.s32 %v59, 16
    %v62 = vadd.s32 %v59, 24
    %v63 = vadd.s32 %v59, 32
    %v64 = vstv %s57
    %v65 = vadd.s32 %v64, %v59
    %v66 = vadd.s32 %v64, %v60
    %v67 = vadd.s32 %v64, %v61
    %v68 = vadd.s32 %v64, %v62
    %v69 = vadd.s32 %v64, %v63
    %vm70 = vcmp.lt.s32.totalorder %v65, 37
    %vm71 = vcmp.lt.s32.totalorder %v66, 37
    %vm72 = vcmp.lt.s32.totalorder %v67, 37
    %vm73 = vcmp.lt.s32.totalorder %v68, 37
    %vm74 = vcmp.lt.s32.totalorder %v69, 37
    %v75 = vsel %vm70, %v44, inf
    %v76 = vsel %vm71, %v47, inf
    %v77 = vsel %vm72, %v50, inf
    %v78 = vsel %vm73, %v53, inf
    %v79 = vsel %vm74, %v56, inf
    %v80 = vmin.f32 %v75, %v79
    %v81 = vmin.f32 %v80, %v76
    %v82 = vmin.f32 %v77, %v78
    %v83 = vmin.f32 %v81, %v82
    %v84 = vrot.slane %v83, 4
    %v85 = vmin.f32 %v83, %v84
    %v86 = vrot.slane %v85, 2
    %v87 = vmin.f32 %v85, %v86
    %v88 = vrot.slane %v87, 1
    %v89 = vmin.f32 %v87, %v88
    %vm90 = vcmp.eq.f32.partialorder %v75, %v89
    %vm91 = vcmp.eq.f32.partialorder %v76, %v89
    %vm92 = vcmp.eq.f32.partialorder %v77, %v89
    %vm93 = vcmp.eq.f32.partialorder %v78, %v89
    %vm94 = vcmp.eq.f32.partialorder %v79, %v89
    %v95 = vsel %vm90, %v65, 2147483647
    %v96 = vsel %vm91, %v66, 2147483647
    %v97 = vsel %vm92, %v67, 2147483647
    %v98 = vsel %vm93, %v68, 2147483647
    %v99 = vsel %vm94, %v69, 2147483647
    %vm100 = vcmp.lt.s32.totalorder %v95, %v99
    %v101 = vsel %vm100, %v95, %v99
    %vm102 = vcmp.lt.s32.totalorder %v101, %v96
    %v103 = vsel %vm102, %v101, %v96
    %vm104 = vcmp.lt.s32.totalorder %v97, %v98
    %v105 = vsel %vm104, %v97, %v98
    %vm106 = vcmp.lt.s32.totalorder %v103, %v105
    %v107 = vsel %vm106, %v103, %v105
    %v108 = vrot.slane %v107, 4
    %vm109 = vcmp.lt.s32.totalorder %v107, %v108
    %v110 = vsel %vm109, %v107, %v108
    %v111 = vrot.slane %v110, 2
    %vm112 = vcmp.lt.s32.totalorder %v110, %v111
    %v113 = vsel %vm112, %v110, %v111
    %v114 = vrot.slane %v113, 1
    %vm115 = vcmp.lt.s32.totalorder %v113, %v114
    %v116 = vsel %vm115, %v113, %v114
    %v117 = vld [vmem:[#allocation2] sm:$0x1]
    %v118 = vld [vmem:[#allocation3] sm:$0x1]
    %vm119 = vcmp.lt.f32.partialorder %v89, %v117
    %v120 = vsel %vm119, %v89, %v117
    %v121 = vsel %vm119, %v116, %v118
    %vm122 = vcmask 0
    %123 = vst.msk [vmem:[#allocation2] sm:$0x1] %vm122, %v120
    %124 = vst.msk [vmem:[#allocation3] sm:$0x1] %vm122, %v121
    %125 = vst.msk [vmem:[#allocation4] sm:$0x1] %vm122, %v121
    // Predicated region
    $region14: #{discrete_traj_action_encode.1} parent=1 // pred_check
      _
    $region15: #{discrete_traj_action_encode.1} parent=1 // pred_check_branch
      %127 = sbr.rel (0) target = $region17
    $region16: #{discrete_traj_action_encode.1} parent=1 // pred_region
      %s129 = ssub.s32 16, 16
      %130 = vsyncadd [#allocation5], %s129
      %s132 = sshll.u32 [#allocation4], 4
      %s133 = int_to_ptr.vmem [resolvable:$true] %s132
      %135 = dma.vmem_to_hbm [thread:$0]  %s133, 16, %s2, [#allocation5]
    $region17: #{discrete_traj_action_encode.1} parent=1 // pred_fallthru
      _
    // Predicated region
    $region18: #{discrete_traj_action_encode.1} parent=1 // pred_check
      _
    $region19: #{discrete_traj_action_encode.1} parent=1 // pred_check_branch
      %137 = sbr.rel (0) target = $region21
    $region20: #{discrete_traj_action_encode.1} parent=1 // pred_region
      %138 = dma.done [#allocation5], 16
    $region21: #{discrete_traj_action_encode.1} parent=1 // pred_fallthru
      _
    %139 = vsyncpa [#allocation5], 1

</llo_original>
